<compile_context>
chip_gen: v7x
topology: tpu7x:2x2x1
jax: 0.10.0
libtpu: 0.0.40
codegen_flags: <defaults>
</compile_context>

<pallas_src>
import jax
import jax.numpy as jnp
from jax.experimental import pallas as pl
from jax.experimental.pallas import tpu as pltpu


def _copy_kernel(src_ref, dst_ref):
    # Pure tile copy: the "compute" of this module is the positional-embedding
    # slice, expressed entirely through the BlockSpec index maps.
    dst_ref[...] = src_ref[...]


def _pick_num_blocks(total_cols, itemsize, max_block_bytes=2 << 20):
    """Pick a block count for a lane-dense (1, total_cols) copy.

    Each block's column count must stay a multiple of 128 (unmasked stores);
    prefer >=2 blocks (v7x megacore sharding) and cap block size so the
    double-buffered in+out footprint stays far below scoped-VMEM defaults.
    """
    n_blk = 1
    for n in (2, 4, 8, 16, 32, 64):
        if total_cols % (n * 128) != 0:
            break
        if n_blk >= 2 and (total_cols // n_blk) * itemsize <= max_block_bytes:
            break
        n_blk = n
    return n_blk


def learnable_positional_embedding(pe, seq_len):
    """Return pe[:, :seq_len, :] via a single (or few) large lane-dense DMAs.

    pe: (1, max_len, d_model); seq_len: static Python int (from x.shape[1]).
    """
    _, max_len, d_model = pe.shape
    assert 0 < seq_len <= max_len
    total = seq_len * d_model
    itemsize = jnp.dtype(pe.dtype).itemsize

    if total % 128 == 0:
        # Lane-dense fast path: view the (contiguous) pe as (1, max_len*d_model)
        # and copy the first seq_len*d_model lanes as a few big 128-multiple
        # blocks.  Output last dim is a multiple of 128 -> unmasked vst.
        pe_flat = pe.reshape(1, max_len * d_model)
        n_blk = _pick_num_blocks(total, itemsize)
        cols = total // n_blk
        out_flat = pl.pallas_call(
            _copy_kernel,
            out_shape=jax.ShapeDtypeStruct((1, total), pe.dtype),
            grid=(n_blk,),
            in_specs=[pl.BlockSpec((1, cols), lambda i: (0, i))],
            out_specs=pl.BlockSpec((1, cols), lambda i: (0, i)),
            compiler_params=pltpu.CompilerParams(
                dimension_semantics=("parallel",),
            ),
        )(pe_flat)
        return out_flat.reshape(1, seq_len, d_model)

    # Fallback (seq_len*d_model not a multiple of 128): one whole-slab copy of
    # the first round_up(seq_len, 8) rows, then a trivial XLA slice.
    seq_pad = min(max_len, ((seq_len + 7) // 8) * 8)
    out = pl.pallas_call(
        _copy_kernel,
        out_shape=jax.ShapeDtypeStruct((1, seq_pad, d_model), pe.dtype),
        grid=(1,),
        in_specs=[pl.BlockSpec((1, seq_pad, d_model), lambda i: (0, 0, 0))],
        out_specs=pl.BlockSpec((1, seq_pad, d_model), lambda i: (0, 0, 0)),
    )(pe)
    return out[:, :seq_len, :]


class LearnablePositionalEmbeddingPallas:
    """Mirror of the PyTorch module; pe initialized deterministically."""

    def __init__(self, d_model, max_len=512, key=None):
        if key is None:
            key = jax.random.PRNGKey(0)
        # torch.nn.init.normal_(self.pe, std=0.02)
        self.pe = 0.02 * jax.random.normal(
            key, (1, max_len, d_model), dtype=jnp.float32
        )

    def __call__(self, x):
        # x: (B, S, D); output: (1, S, d_model) — independent of batch,
        # broadcast is left to the caller (same as the PyTorch module).
        seq_len = x.shape[1]
        return learnable_positional_embedding(self.pe, seq_len)


if __name__ == "__main__":
    key = jax.random.PRNGKey(0)
    k_pe, k_x = jax.random.split(key)

    d_model = 32
    max_len = 512
    batch, seq = 2, 8

    module = LearnablePositionalEmbeddingPallas(d_model, max_len=max_len, key=k_pe)

    x = jax.random.normal(k_x, (batch, seq, d_model), dtype=jnp.float32)

    out = module(x)
    out = jax.block_until_ready(out)

    # Reference: plain slice of pe (exact match expected — kernel is a copy).
    ref = module.pe[:, :seq, :]
    assert out.shape == (1, seq, d_model), out.shape
    assert out.dtype == jnp.float32
    assert jnp.array_equal(out, ref), "mismatch vs reference slice"

    # Also exercise a non-128-multiple flat size to cover the fallback path.
    out_odd = learnable_positional_embedding(module.pe, 5)
    out_odd = jax.block_until_ready(out_odd)
    assert jnp.array_equal(out_odd, module.pe[:, :5, :]), "fallback mismatch"

    print("KERNEL_OK")
</pallas_src>

<mosaic_0001>
module attributes {stable_mosaic.version = 11 : i64} {
  func.func @_copy_kernel(%arg0: i32, %arg1: memref<1x128xf32, #tpu.memory_space<vmem>>, %arg2: memref<1x128xf32, #tpu.memory_space<vmem>>) attributes {dimension_semantics = [#tpu.dimension_semantics<parallel>], iteration_bounds = array<i64: 2>, scalar_prefetch = 0 : i64, scratch_operands = 0 : i64, tpu.core_type = #tpu.core_type<tc>, window_params = [{transform_indices = @transform_0, window_bounds = array<i64: 1, 128>}, {transform_indices = @transform_1, window_bounds = array<i64: 1, 128>}]} {
    %c0 = arith.constant 0 : index
    %c0_0 = arith.constant 0 : index
    %0 = vector.load %arg1[%c0, %c0_0] : memref<1x128xf32, #tpu.memory_space<vmem>>, vector<1x128xf32>
    %c0_1 = arith.constant 0 : index
    %c0_2 = arith.constant 0 : index
    %1 = vector.load %arg2[%c0_1, %c0_2] : memref<1x128xf32, #tpu.memory_space<vmem>>, vector<1x128xf32>
    tpu.vector_store %arg2[%c0_1, %c0_2], %0 {strides = array<i32>} : memref<1x128xf32, #tpu.memory_space<vmem>>, vector<1x128xf32>,
    return
  }
  func.func @transform_0(%arg0: i32) -> (i32, i32) {
    %c0_i32 = arith.constant 0 : i32
    %c0_i32_0 = arith.constant 0 : i32
    return %c0_i32, %arg0 : i32, i32
  }
  func.func @transform_1(%arg0: i32) -> (i32, i32) {
    %c0_i32 = arith.constant 0 : i32
    %c0_i32_0 = arith.constant 0 : i32
    return %c0_i32, %arg0 : i32, i32
  }
}

</mosaic_0001>

<llo_original>
// kernel: tpu_custom_call.1
$region0: #{tpu_custom_call.1}
  #allocation0 [shape = 'u32[]', space=smem, size = 0x4, offset = 0x4, fixed_abs, tag = 'smem constant byte address 0x4 - core index']
  #allocation1 [shape = 'u32[144,128]{1,0:T(1,128)}', space=vmem, size = 0x12000, scoped, tag = 'internal scratch']
  %s0 = inlined_call_operand.hbm [shape: f32[1,16384], index: 0, kind: input, shape index: {}]
  %s1 = inlined_call_operand.hbm [shape: f32[1,256], index: 1, kind: output, shape index: {}]
  %s2 = sld [smem:[#allocation0]]
  $region41: #{tpu_custom_call.1} parent=0
    _
  %s4 = ssub.s32 1, %s2
  %s5 = scalar_select 0, %s4, %s2
  $region1: #{tpu_custom_call.1} parent=0
    #allocation2 [shape = 'u8[1024]{0}', space=vmem, size = 0x400, scoped, tag = 'input window, operand 0']
    #allocation3 [shape = 's32[2]{0}', space=sflag, size = 0x8, scoped, tag = 'scoped memory for tpu_custom_call.1']
    #allocation4 [shape = 's32[2]{0}', space=sflag, size = 0x8, scoped, tag = 'scoped memory for tpu_custom_call.1']
    #allocation5 [shape = 'u8[1024]{0}', space=vmem, size = 0x400, scoped, tag = 'output window, operand 0']
    %6 = vsyncpa [#allocation3], 0
    %s7 = scalar_lea.sflag [#allocation3], 1
    %8 = vsyncpa %s7, 0
    %9 = vsyncpa [#allocation4], 0
    %s10 = scalar_lea.sflag [#allocation4], 1
    %11 = vsyncpa %s10, 0
    loop: start=0, step=1, limit=4
    $region2: #{tpu_custom_call.1} parent=1 // loop_pre_header
      _
    $region3: #{tpu_custom_call.1} parent=1 // loop_header
      %s13 = sphi 0, %s17
      %p14 = scmp.ge.s32.totalorder %s13, 4
      %s23 = sphi 0, %s25
      %s26 = sphi 0, %s23
      %s27 = sphi 0, %s26
      %s43 = sphi 0, %s27
      %s49 = sphi 0, %s51
      %s52 = sphi 0, %s49
      %s53 = sphi 0, %s52
      %s69 = sphi 0, %s53
    $region4: #{tpu_custom_call.1} parent=1 // loop_header_branch
      %16 = sbr.rel (%p14) target = $region8
    $region5: #{tpu_custom_call.1} parent=1 // loop_body
      %s18 = ssub.s32 %s13, 1
      %s19 = ssub.s32 %s13, 2
      %s20 = sadd.s32 %s13, 1
      %s21 = ssub.s32 %s13, %s20
      %p22 = scmp.eq.s32.totalorder %s21, 0
      %s24 = sadd.s32 %s23, 1
      %s25 = scalar_select %p22, %s23, %s24
      %p28 = pneg %p22
      %p29 = scmp.eq.s32.totalorder %s13, 1
      %p30 = por %p28, %p29
      %p31 = scmp.ne.s32.totalorder %s23, %s26
      %p32 = scmp.eq.s32.totalorder %s13, 0
      %p33 = por %p31, %p32
      %p34 = scmp.ne.s32.totalorder %s23, %s26
      %p35 = scmp.eq.s32.totalorder %s18, 1
      %p36 = por %p34, %p35
      %p37 = scmp.ne.s32.totalorder %s26, %s27
      %p38 = scmp.eq.s32.totalorder %s18, 0
      %p39 = por %p37, %p38
      %p40 = scmp.ne.s32.totalorder %s26, %s27
      %p41 = scmp.eq.s32.totalorder %s19, 1
      %p42 = por %p40, %p41
      %p44 = scmp.ne.s32.totalorder %s27, %s43
      %p45 = scmp.eq.s32.totalorder %s19, 0
      %p46 = por %p44, %p45
      %s47 = ssub.s32 %s13, %s20
      %p48 = scmp.eq.s32.totalorder %s47, 0
      %s50 = sadd.s32 %s49, 1
      %s51 = scalar_select %p48, %s49, %s50
      %p54 = pneg %p48
      %p55 = scmp.eq.s32.totalorder %s13, 1
      %p56 = por %p54, %p55
      %p57 = scmp.ne.s32.totalorder %s49, %s52
      %p58 = scmp.eq.s32.totalorder %s13, 0
      %p59 = por %p57, %p58
      %p60 = scmp.ne.s32.totalorder %s49, %s52
      %p61 = scmp.eq.s32.totalorder %s18, 1
      %p62 = por %p60, %p61
      %p63 = scmp.ne.s32.totalorder %s52, %s53
      %p64 = scmp.eq.s32.totalorder %s18, 0
      %p65 = por %p63, %p64
      %p66 = scmp.ne.s32.totalorder %s52, %s53
      %p67 = scmp.eq.s32.totalorder %s19, 1
      %p68 = por %p66, %p67
      %p70 = scmp.ne.s32.totalorder %s53, %s69
      %p71 = scmp.eq.s32.totalorder %s19, 0
      %p72 = por %p70, %p71
      %p73 = scmp.le.s32.totalorder 1, %s13
      %p74 = scmp.lt.s32.totalorder %s13, 3
      %p75 = pnand %p73, %p74
      %p76 = pneg %p75
      // Predicated region
      $region9: #{tpu_custom_call.1} parent=5 // pred_check
        _
      $region10: #{tpu_custom_call.1} parent=5 // pred_check_branch
        %78 = sbr.rel (%p75) target = $region12
      $region11: #{tpu_custom_call.1} parent=5 // pred_region
        %s79 = ssub.s32 %s13, 1
      $region12: #{tpu_custom_call.1} parent=5 // pred_fallthru
        _
      %p80 = scmp.lt.s32.totalorder %s13, 2
      // Predicated region
      $region13: #{tpu_custom_call.1} parent=5 // pred_check
        %p81 = pneg %p80
      $region14: #{tpu_custom_call.1} parent=5 // pred_check_branch
        %83 = sbr.rel (%p81) target = $region16
      $region15: #{tpu_custom_call.1} parent=5 // pred_region
        // Predicated region
        $region17: #{tpu_custom_call.1} parent=15 // pred_check
          %p84 = pneg %p33
        $region18: #{tpu_custom_call.1} parent=15 // pred_check_branch
          %86 = sbr.rel (%p84) target = $region20
        $region19: #{tpu_custom_call.1} parent=15 // pred_region
          %s87 = sand.u32 %s23, 1
          %s88 = scalar_lea.sflag [#allocation3], %s87
          %s89 = sand.u32 %s23, 1
          %s90 = scalar_lea.vmem [#allocation2], %s89
          %s92 = ssub.s32 16, 16
          %93 = vsyncadd %s88, %s92
          %s94 = smul.addr %s13, 16
          %s95 = scalar_lea.hbm %s0, %s94
          %s97 = sshll.u32 %s90, 4
          %s98 = int_to_ptr.vmem [resolvable:$true] %s97
          %100 = dma.hbm_to_vmem [thread:$0]  %s95, 16, %s98, %s88
        $region20: #{tpu_custom_call.1} parent=15 // pred_fallthru
          _
      $region16: #{tpu_custom_call.1} parent=5 // pred_fallthru
        _
      %p101 = scmp.le.s32.totalorder 1, %s13
      %p102 = scmp.lt.s32.totalorder %s13, 3
      %p103 = pnand %p101, %p102
      %p104 = pneg %p103
      // Predicated region
      $region21: #{tpu_custom_call.1} parent=5 // pred_check
        _
      $region22: #{tpu_custom_call.1} parent=5 // pred_check_branch
        %106 = sbr.rel (%p103) target = $region24
      $region23: #{tpu_custom_call.1} parent=5 // pred_region
        %s107 = ssub.s32 %s13, 1
        %s108 = sand.u32 %s26, 1
        %s109 = scalar_lea.sflag [#allocation3], %s108
        %s110 = sand.u32 %s26, 1
        %s111 = scalar_lea.vmem [#allocation2], %s110
        // Predicated region
        $region25: #{tpu_custom_call.1} parent=23 // pred_check
          %p112 = pneg %p39
        $region26: #{tpu_custom_call.1} parent=23 // pred_check_branch
          %114 = sbr.rel (%p112) target = $region28
        $region27: #{tpu_custom_call.1} parent=23 // pred_region
          %115 = dma.done %s109, 16
        $region28: #{tpu_custom_call.1} parent=23 // pred_fallthru
          _
        %s116 = sand.u32 %s26, 1
        %s117 = scalar_lea.sflag [#allocation3], %s116
        %s118 = sand.u32 %s26, 1
        %s119 = scalar_lea.vmem [#allocation2], %s118
        %p120 = pneg %p39
        %p121 = pneg %p36
        %p122 = pneg %p65
        %p123 = pneg %p62
        %s124 = sand.u32 %s52, 1
        %s125 = scalar_lea.sflag [#allocation4], %s124
        %s126 = sand.u32 %s52, 1
        %s127 = scalar_lea.vmem [#allocation5], %s126
        %v128 = vld [vmem:[%s111] sm:$0x1]
        %129 = vst [vmem:[%s127] sm:$0x1] %v128
        %s130 = sand.u32 %s52, 1
        %s131 = scalar_lea.sflag [#allocation4], %s130
        %s132 = sand.u32 %s52, 1
        %s133 = scalar_lea.vmem [#allocation5], %s132
        // Predicated region
        $region29: #{tpu_custom_call.1} parent=23 // pred_check
          %p134 = pneg %p62
        $region30: #{tpu_custom_call.1} parent=23 // pred_check_branch
          %136 = sbr.rel (%p134) target = $region32
        $region31: #{tpu_custom_call.1} parent=23 // pred_region
          %s138 = ssub.s32 16, 16
          %139 = vsyncadd %s131, %s138
          %s140 = smul.addr %s18, 16
          %s141 = scalar_lea.hbm %s1, %s140
          %s143 = sshll.u32 %s133, 4
          %s144 = int_to_ptr.vmem [resolvable:$true] %s143
          %146 = dma.vmem_to_hbm [thread:$0]  %s144, 16, %s141, %s131
        $region32: #{tpu_custom_call.1} parent=23 // pred_fallthru
          _
      $region24: #{tpu_custom_call.1} parent=5 // pred_fallthru
        _
      %p147 = scmp.le.s32.totalorder 2, %s13
      // Predicated region
      $region33: #{tpu_custom_call.1} parent=5 // pred_check
        %p148 = pneg %p147
      $region34: #{tpu_custom_call.1} parent=5 // pred_check_branch
        %150 = sbr.rel (%p148) target = $region36
      $region35: #{tpu_custom_call.1} parent=5 // pred_region
        %s151 = ssub.s32 %s13, 2
        // Predicated region
        $region37: #{tpu_custom_call.1} parent=35 // pred_check
          %p152 = pneg %p68
        $region38: #{tpu_custom_call.1} parent=35 // pred_check_branch
          %154 = sbr.rel (%p152) target = $region40
        $region39: #{tpu_custom_call.1} parent=35 // pred_region
          %s155 = sand.u32 %s53, 1
          %s156 = scalar_lea.sflag [#allocation4], %s155
          %s157 = sand.u32 %s53, 1
          %s158 = scalar_lea.vmem [#allocation5], %s157
          %159 = dma.done %s156, 16
        $region40: #{tpu_custom_call.1} parent=35 // pred_fallthru
          _
      $region36: #{tpu_custom_call.1} parent=5 // pred_fallthru
        _
    $region6: #{tpu_custom_call.1} parent=1 // loop_footer
      %s17 = sadd.s32 1, %s13
    $region7: #{tpu_custom_call.1} parent=1 // loop_footer_branch
      %12 = sbr.rel target = $region3
    $region8: #{tpu_custom_call.1} parent=1 // loop_exit
      _
    %160 = vsyncpa [#allocation3], 1
    %s161 = scalar_lea.sflag [#allocation3], 1
    %162 = vsyncpa %s161, 1
    %163 = vsyncpa [#allocation4], 1
    %s164 = scalar_lea.sflag [#allocation4], 1
    %165 = vsyncpa %s164, 1

</llo_original>
